<compile_context>
chip_gen: v5e
topology: v5e:2x2
jax: 0.10.0
libtpu: 0.0.40
codegen_flags: <defaults>
</compile_context>

<pallas_src>
import functools

import jax
import jax.numpy as jnp
from jax import lax
from jax.experimental import pallas as pl
from jax.experimental.pallas import tpu as pltpu

NEG_SLOPE = 0.1
BN_EPS = 1e-3
LANE = 128


def _fold_bn(gamma, beta, mean, var, eps=BN_EPS):
    scale = gamma / jnp.sqrt(var + eps)
    shift = beta - mean * scale
    return scale, shift


def _module_ers_kernel(x_ref, dw9_ref, pwt_ref, b1_ref, b2_ref, mask_ref,
                       out_ref, *, W, HWp, Cin, Cout, residual, use_mxu):
    """One batch image per grid step.

    x_ref   : (1, Cin, HWp)  streamed input (bf16/f32), spatial on lanes
    dw9_ref : (Cin, 9)       depthwise weights * BN1 scale (f32)
    pwt_ref : (Cout, Cin)    pointwise weights * BN2 scale (bf16 on MXU path)
    b1_ref  : (Cin, 1)       BN1 bias
    b2_ref  : (Cout, 1)      BN2 bias
    mask_ref: (4, HWp)       [src col != W-1, src col != 0, row != 0, row != H-1]
    out_ref : (1, Cout, HWp)
    """
    x = x_ref[0].astype(jnp.float32)                        # (Cin, HWp)

    m_nlc = mask_ref[0:1, :]      # source not in last column
    m_nfc = mask_ref[1:2, :]      # source not in first column
    m_top = mask_ref[2:3, :]      # output not in first row
    m_bot = mask_ref[3:4, :]      # output not in last row

    # Column-neighbour taps as XLU lane rotations (no concat / unaligned
    # slices).  Pre-masking the source columns zeroes the row-wrap lanes.
    s_left = pltpu.roll(x * m_nlc, 1, 1)                    # x[p-1], 0 at col 0
    s_right = pltpu.roll(x * m_nfc, HWp - 1, 1)             # x[p+1], 0 at col W-1

    dw9 = dw9_ref[...]                                      # (Cin, 9)

    def w(k):
        return dw9[:, k:k + 1]                              # (Cin, 1)

    # Partial sums per kernel row; then shift whole rows by +-W and mask the
    # image top/bottom once per group (4 rolls + 4 mask multiplies total).
    t_top = w(0) * s_left + w(1) * x + w(2) * s_right
    t_mid = w(3) * s_left + w(4) * x + w(5) * s_right
    t_bot = w(6) * s_left + w(7) * x + w(8) * s_right
    acc = (pltpu.roll(t_top, W % HWp, 1) * m_top
           + t_mid
           + pltpu.roll(t_bot, (HWp - W) % HWp, 1) * m_bot)

    # BN1 bias (scale already folded into dw9) + LeakyReLU(0.1).
    y = acc + b1_ref[...]
    y = jnp.where(y > 0, y, NEG_SLOPE * y)                  # (Cin, HWp) f32

    # Pointwise 1x1 + BN2 bias + LeakyReLU (+ residual).
    if use_mxu:
        # Single wide matmul (N = HWp lanes); bf16 operands, f32 accumulation.
        z = jnp.dot(pwt_ref[...], y.astype(pwt_ref.dtype),
                    preferred_element_type=jnp.float32)
    else:
        # Tiny contraction: unrolled VPU broadcast-MACs in f32.
        pwt = pwt_ref[...]
        z = None
        for ci in range(Cin):
            t = pwt[:, ci:ci + 1] * y[ci:ci + 1, :]         # (Cout,1)*(1,HWp)
            z = t if z is None else z + t
    z = z + b2_ref[...]
    z = jnp.where(z > 0, z, NEG_SLOPE * z)
    if residual:                                            # static decision
        z = z + x
    out_ref[0] = z.astype(out_ref.dtype)


def _vmem_cap_bytes():
    """~3/4 of the per-core VMEM capacity (falls back to v7x's 64 MiB)."""
    try:
        cap = int(pltpu.get_tpu_info().vmem_capacity_bytes)
    except Exception:
        cap = 64 << 20
    return (cap * 3) // 4


def _vmem_estimate_bytes(Cin, Cout, HWp, stream_bytes):
    """Per-step VMEM: double-buffered I/O streams + f32 in-kernel temps."""
    streams = 2 * (Cin + Cout) * HWp * stream_bytes          # 2x = double buffer
    interm = (8 * Cin + 3 * Cout) * HWp * 4                  # x, xl, xr, taps, y, z, ...
    consts = (4 * HWp + 12 * Cin + Cout * (Cin + 2)) * 4     # masks + weights + biases
    return streams + interm + consts


def module_ers_forward(x_nchw, params, *, stream_dtype=jnp.bfloat16,
                       mxu_bf16=True, use_mxu=None):
    """Pallas forward. x_nchw: (N, Cin, H, W). Returns (N, Cout, H, W) in
    `stream_dtype` (bf16 by default: this block is HBM-bandwidth bound)."""
    N, Cin, H, W = x_nchw.shape
    Cout = params["pw"].shape[1]
    HW = H * W
    HWp = ((HW + LANE - 1) // LANE) * LANE          # lane-dense loads/stores
    residual = (Cin == Cout)
    if use_mxu is None:
        use_mxu = (Cin >= 16) and (Cout >= 16)
    pw_dtype = jnp.bfloat16 if (use_mxu and mxu_bf16) else jnp.float32

    stream_bytes = jnp.dtype(stream_dtype).itemsize
    est = _vmem_estimate_bytes(Cin, Cout, HWp, stream_bytes)
    cap = _vmem_cap_bytes()
    if est > cap:
        raise ValueError(
            f"per-step VMEM estimate {est >> 20} MiB exceeds ~{cap >> 20} MiB; "
            "this image size needs the spatial (H-tile + halo) grid axis "
            "(see TODO(synk)).")
    vmem_limit = int(min(max(est * 5 // 4, 32 << 20), cap))

    # Free reshape (no transpose); cast to the streaming dtype; lane-pad HW
    # (only when H*W is not already a multiple of 128).
    x3 = x_nchw.reshape(N, Cin, HW).astype(stream_dtype)
    if HWp != HW:
        x3 = jnp.pad(x3, ((0, 0), (0, 0), (0, HWp - HW)))

    # Fold BN scales into the conv weights; only the biases enter the kernel.
    s1, b1 = _fold_bn(*params["bn1"])
    s2, b2 = _fold_bn(*params["bn2"])
    dw9 = (params["dw"].astype(jnp.float32) * s1[None, None, :])   # (3,3,Cin)
    dw9 = dw9.reshape(9, Cin).T                                    # (Cin, 9)
    pwt = (params["pw"].astype(jnp.float32) * s2[None, :]).T       # (Cout,Cin)
    pwt = pwt.astype(pw_dtype)
    b1v = b1.reshape(Cin, 1).astype(jnp.float32)
    b2v = b2.reshape(Cout, 1).astype(jnp.float32)

    # Boundary masks over the (lane-padded) flattened spatial axis.
    q = jnp.arange(HWp, dtype=jnp.int32)
    col, row, valid = q % W, q // W, q < HW
    masks = jnp.stack([(col != W - 1) & valid,     # pre-mask for left-neighbour taps
                       (col != 0) & valid,         # pre-mask for right-neighbour taps
                       (row != 0) & valid,         # kernel-row-above valid
                       (row != H - 1) & valid],    # kernel-row-below valid
                      ).astype(jnp.float32)        # (4, HWp)

    kernel = functools.partial(
        _module_ers_kernel, W=W, HWp=HWp, Cin=Cin, Cout=Cout,
        residual=residual, use_mxu=use_mxu)

    out3 = pl.pallas_call(
        kernel,
        out_shape=jax.ShapeDtypeStruct((N, Cout, HWp), stream_dtype),
        grid_spec=pltpu.PrefetchScalarGridSpec(
            num_scalar_prefetch=0,
            grid=(N,),                                 # >= 2 steps when N >= 2
            in_specs=[
                pl.BlockSpec((1, Cin, HWp), lambda n: (n, 0, 0)),   # x
                pl.BlockSpec((Cin, 9), lambda n: (0, 0)),           # dw * s1
                pl.BlockSpec((Cout, Cin), lambda n: (0, 0)),        # (pw*s2)^T
                pl.BlockSpec((Cin, 1), lambda n: (0, 0)),           # b1
                pl.BlockSpec((Cout, 1), lambda n: (0, 0)),          # b2
                pl.BlockSpec((4, HWp), lambda n: (0, 0)),           # masks
            ],
            out_specs=pl.BlockSpec((1, Cout, HWp), lambda n: (n, 0, 0)),
        ),
        compiler_params=pltpu.CompilerParams(
            dimension_semantics=("parallel",),
            vmem_limit_bytes=vmem_limit),
    )(x3, dw9, pwt, b1v, b2v, masks)

    # Crop the lane padding (no-op when HWp == HW); free reshape back to NCHW.
    return out3[:, :, :HW].reshape(N, Cout, H, W)


def reference_forward(x_nchw, params):
    """Pure-JAX reference (lax.conv) of the same forward pass, in f32."""
    x = x_nchw.astype(jnp.float32)
    Cin = x.shape[1]
    Cout = params["pw"].shape[1]

    w_dw = params["dw"][:, :, None, :]                 # (3, 3, 1, Cin) HWIO
    y = lax.conv_general_dilated(
        x, w_dw, window_strides=(1, 1), padding=((1, 1), (1, 1)),
        dimension_numbers=("NCHW", "HWIO", "NCHW"), feature_group_count=Cin)

    s1, b1 = _fold_bn(*params["bn1"])
    y = y * s1.reshape(1, Cin, 1, 1) + b1.reshape(1, Cin, 1, 1)
    y = jnp.where(y > 0, y, NEG_SLOPE * y)

    z = jnp.einsum("nchw,co->nohw", y, params["pw"])

    s2, b2 = _fold_bn(*params["bn2"])
    z = z * s2.reshape(1, Cout, 1, 1) + b2.reshape(1, Cout, 1, 1)
    z = jnp.where(z > 0, z, NEG_SLOPE * z)

    if Cout == Cin:
        z = z + x
    return z


def init_params(key, cin, cout):
    ks = jax.random.split(key, 10)
    dw = 0.3 * jax.random.normal(ks[0], (3, 3, cin), jnp.float32)      # depthwise W
    pw = 0.3 * jax.random.normal(ks[1], (cin, cout), jnp.float32)      # pointwise W
    bn1 = (1.0 + 0.1 * jax.random.normal(ks[2], (cin,), jnp.float32),
           0.1 * jax.random.normal(ks[3], (cin,), jnp.float32),
           0.1 * jax.random.normal(ks[4], (cin,), jnp.float32),
           0.5 + jnp.abs(jax.random.normal(ks[5], (cin,), jnp.float32)))
    bn2 = (1.0 + 0.1 * jax.random.normal(ks[6], (cout,), jnp.float32),
           0.1 * jax.random.normal(ks[7], (cout,), jnp.float32),
           0.1 * jax.random.normal(ks[8], (cout,), jnp.float32),
           0.5 + jnp.abs(jax.random.normal(ks[9], (cout,), jnp.float32)))
    return {"dw": dw, "pw": pw, "bn1": bn1, "bn2": bn2}


if __name__ == "__main__":
    key = jax.random.PRNGKey(0)
    kx, kp1, kp2, kp3, kp4, kx3, kx4 = jax.random.split(key, 7)

    N, Cin, H, W = 2, 4, 16, 16
    x = jax.random.normal(kx, (N, Cin, H, W), jnp.float32)

    # Case 1: full-precision mode (f32 streams), Cout == Cin -> residual,
    # tiny channels -> VPU pointwise.  Tight tolerance validates the math.
    params_a = init_params(kp1, Cin, Cin)
    out_a = jax.block_until_ready(
        module_ers_forward(x, params_a, stream_dtype=jnp.float32))
    ref_a = reference_forward(x, params_a)
    assert out_a.shape == (N, Cin, H, W) and out_a.dtype == jnp.float32
    assert jnp.allclose(out_a, ref_a, atol=1e-3, rtol=1e-3), "case 1 mismatch"

    # Case 2: default bf16 streaming, Cout != Cin -> no residual (VPU path).
    # Reference is fed the same bf16-rounded input; remaining error is the
    # bf16 output store.
    Cout = 8
    params_b = init_params(kp2, Cin, Cout)
    out_b = jax.block_until_ready(module_ers_forward(x, params_b))
    x_q = x.astype(jnp.bfloat16).astype(jnp.float32)
    ref_b = reference_forward(x_q, params_b)
    assert out_b.shape == (N, Cout, H, W)
    assert jnp.allclose(out_b.astype(jnp.float32), ref_b,
                        atol=1e-2, rtol=1e-2), "case 2 mismatch"

    # Case 3: larger channel count -> bf16 MXU pointwise (+ residual), bf16
    # streams; tolerance loosened for bf16 operands (f32 accumulation).
    Cin3 = 32
    x3 = jax.random.normal(kx3, (N, Cin3, H, W), jnp.float32)
    params_c = init_params(kp3, Cin3, Cin3)
    out_c = jax.block_until_ready(module_ers_forward(x3, params_c))
    ref_c = reference_forward(x3.astype(jnp.bfloat16).astype(jnp.float32),
                              params_c)
    assert out_c.shape == (N, Cin3, H, W)
    assert jnp.allclose(out_c.astype(jnp.float32), ref_c,
                        atol=5e-2, rtol=2e-2), "case 3 mismatch"

    # Case 4: H*W not a multiple of 128 -> exercises the lane-pad + crop path
    # (f32 streams so the tolerance stays tight).
    H4 = W4 = 10
    x4 = jax.random.normal(kx4, (N, Cin, H4, W4), jnp.float32)
    params_d = init_params(kp4, Cin, Cin)
    out_d = jax.block_until_ready(
        module_ers_forward(x4, params_d, stream_dtype=jnp.float32))
    ref_d = reference_forward(x4, params_d)
    assert out_d.shape == (N, Cin, H4, W4)
    assert jnp.allclose(out_d, ref_d, atol=1e-3, rtol=1e-3), "case 4 mismatch"

    print("KERNEL_OK")
</pallas_src>

<mosaic_0001>
module attributes {stable_mosaic.version = 11 : i64} {
  func.func @_module_ers_kernel(%arg0: i32, %arg1: memref<1x4x256xf32, #tpu.memory_space<vmem>>, %arg2: memref<4x9xf32, #tpu.memory_space<vmem>>, %arg3: memref<4x4xf32, #tpu.memory_space<vmem>>, %arg4: memref<4x1xf32, #tpu.memory_space<vmem>>, %arg5: memref<4x1xf32, #tpu.memory_space<vmem>>, %arg6: memref<4x256xf32, #tpu.memory_space<vmem>>, %arg7: memref<1x4x256xf32, #tpu.memory_space<vmem>>) attributes {dimension_semantics = [#tpu.dimension_semantics<parallel>], iteration_bounds = array<i64: 2>, scalar_prefetch = 0 : i64, scratch_operands = 0 : i64, tpu.core_type = #tpu.core_type<tc>, window_params = [{transform_indices = @transform_0, window_bounds = array<i64: 1, 4, 256>}, {pipeline_mode = #tpu.pipeline_mode<synchronous>, transform_indices = @transform_1, window_bounds = array<i64: 4, 9>}, {pipeline_mode = #tpu.pipeline_mode<synchronous>, transform_indices = @transform_2, window_bounds = array<i64: 4, 4>}, {pipeline_mode = #tpu.pipeline_mode<synchronous>, transform_indices = @transform_3, window_bounds = array<i64: 4, 1>}, {pipeline_mode = #tpu.pipeline_mode<synchronous>, transform_indices = @transform_4, window_bounds = array<i64: 4, 1>}, {pipeline_mode = #tpu.pipeline_mode<synchronous>, transform_indices = @transform_5, window_bounds = array<i64: 4, 256>}, {transform_indices = @transform_6, window_bounds = array<i64: 1, 4, 256>}]} {
    %c0 = arith.constant 0 : index
    %c0_0 = arith.constant 0 : index
    %c0_1 = arith.constant 0 : index
    %0 = vector.load %arg1[%c0, %c0_0, %c0_1] : memref<1x4x256xf32, #tpu.memory_space<vmem>>, vector<1x4x256xf32>
    %1 = vector.shape_cast %0 : vector<1x4x256xf32> to vector<4x256xf32>
    %c0_2 = arith.constant 0 : index
    %c0_3 = arith.constant 0 : index
    %2 = vector.load %arg6[%c0_2, %c0_3] : memref<4x256xf32, #tpu.memory_space<vmem>>, vector<1x256xf32>
    %c1 = arith.constant 1 : index
    %c0_4 = arith.constant 0 : index
    %3 = vector.load %arg6[%c1, %c0_4] : memref<4x256xf32, #tpu.memory_space<vmem>>, vector<1x256xf32>
    %c2 = arith.constant 2 : index
    %c0_5 = arith.constant 0 : index
    %4 = vector.load %arg6[%c2, %c0_5] : memref<4x256xf32, #tpu.memory_space<vmem>>, vector<1x256xf32>
    %c3 = arith.constant 3 : index
    %c0_6 = arith.constant 0 : index
    %5 = vector.load %arg6[%c3, %c0_6] : memref<4x256xf32, #tpu.memory_space<vmem>>, vector<1x256xf32>
    %6 = vector.broadcast %2 : vector<1x256xf32> to vector<4x256xf32>
    %7 = arith.mulf %1, %6 : vector<4x256xf32>
    %c1_i32 = arith.constant 1 : i32
    %8 = tpu.dynamic_rotate %7 by %c1_i32 dim 1 : vector<4x256xf32>, i32 -> vector<4x256xf32>
    %9 = vector.broadcast %3 : vector<1x256xf32> to vector<4x256xf32>
    %10 = arith.mulf %1, %9 : vector<4x256xf32>
    %c255_i32 = arith.constant 255 : i32
    %11 = tpu.dynamic_rotate %10 by %c255_i32 dim 1 : vector<4x256xf32>, i32 -> vector<4x256xf32>
    %c0_7 = arith.constant 0 : index
    %c0_8 = arith.constant 0 : index
    %12 = vector.load %arg2[%c0_7, %c0_8] : memref<4x9xf32, #tpu.memory_space<vmem>>, vector<4x9xf32>
    %13 = vector.extract_strided_slice %12 {offsets = [0, 0], sizes = [4, 1], strides = [1, 1]} : vector<4x9xf32> to vector<4x1xf32>
    %14 = vector.broadcast %13 : vector<4x1xf32> to vector<4x256xf32>
    %15 = arith.mulf %14, %8 : vector<4x256xf32>
    %16 = vector.extract_strided_slice %12 {offsets = [0, 1], sizes = [4, 1], strides = [1, 1]} : vector<4x9xf32> to vector<4x1xf32>
    %17 = vector.broadcast %16 : vector<4x1xf32> to vector<4x256xf32>
    %18 = arith.mulf %17, %1 : vector<4x256xf32>
    %19 = arith.addf %15, %18 : vector<4x256xf32>
    %20 = vector.extract_strided_slice %12 {offsets = [0, 2], sizes = [4, 1], strides = [1, 1]} : vector<4x9xf32> to vector<4x1xf32>
    %21 = vector.broadcast %20 : vector<4x1xf32> to vector<4x256xf32>
    %22 = arith.mulf %21, %11 : vector<4x256xf32>
    %23 = arith.addf %19, %22 : vector<4x256xf32>
    %24 = vector.extract_strided_slice %12 {offsets = [0, 3], sizes = [4, 1], strides = [1, 1]} : vector<4x9xf32> to vector<4x1xf32>
    %25 = vector.broadcast %24 : vector<4x1xf32> to vector<4x256xf32>
    %26 = arith.mulf %25, %8 : vector<4x256xf32>
    %27 = vector.extract_strided_slice %12 {offsets = [0, 4], sizes = [4, 1], strides = [1, 1]} : vector<4x9xf32> to vector<4x1xf32>
    %28 = vector.broadcast %27 : vector<4x1xf32> to vector<4x256xf32>
    %29 = arith.mulf %28, %1 : vector<4x256xf32>
    %30 = arith.addf %26, %29 : vector<4x256xf32>
    %31 = vector.extract_strided_slice %12 {offsets = [0, 5], sizes = [4, 1], strides = [1, 1]} : vector<4x9xf32> to vector<4x1xf32>
    %32 = vector.broadcast %31 : vector<4x1xf32> to vector<4x256xf32>
    %33 = arith.mulf %32, %11 : vector<4x256xf32>
    %34 = arith.addf %30, %33 : vector<4x256xf32>
    %35 = vector.extract_strided_slice %12 {offsets = [0, 6], sizes = [4, 1], strides = [1, 1]} : vector<4x9xf32> to vector<4x1xf32>
    %36 = vector.broadcast %35 : vector<4x1xf32> to vector<4x256xf32>
    %37 = arith.mulf %36, %8 : vector<4x256xf32>
    %38 = vector.extract_strided_slice %12 {offsets = [0, 7], sizes = [4, 1], strides = [1, 1]} : vector<4x9xf32> to vector<4x1xf32>
    %39 = vector.broadcast %38 : vector<4x1xf32> to vector<4x256xf32>
    %40 = arith.mulf %39, %1 : vector<4x256xf32>
    %41 = arith.addf %37, %40 : vector<4x256xf32>
    %42 = vector.extract_strided_slice %12 {offsets = [0, 8], sizes = [4, 1], strides = [1, 1]} : vector<4x9xf32> to vector<4x1xf32>
    %43 = vector.broadcast %42 : vector<4x1xf32> to vector<4x256xf32>
    %44 = arith.mulf %43, %11 : vector<4x256xf32>
    %45 = arith.addf %41, %44 : vector<4x256xf32>
    %c16_i32 = arith.constant 16 : i32
    %46 = tpu.dynamic_rotate %23 by %c16_i32 dim 1 : vector<4x256xf32>, i32 -> vector<4x256xf32>
    %47 = vector.broadcast %4 : vector<1x256xf32> to vector<4x256xf32>
    %48 = arith.mulf %46, %47 : vector<4x256xf32>
    %49 = arith.addf %48, %34 : vector<4x256xf32>
    %c240_i32 = arith.constant 240 : i32
    %50 = tpu.dynamic_rotate %45 by %c240_i32 dim 1 : vector<4x256xf32>, i32 -> vector<4x256xf32>
    %51 = vector.broadcast %5 : vector<1x256xf32> to vector<4x256xf32>
    %52 = arith.mulf %50, %51 : vector<4x256xf32>
    %53 = arith.addf %49, %52 : vector<4x256xf32>
    %c0_9 = arith.constant 0 : index
    %c0_10 = arith.constant 0 : index
    %54 = vector.load %arg4[%c0_9, %c0_10] : memref<4x1xf32, #tpu.memory_space<vmem>>, vector<4x1xf32>
    %55 = vector.broadcast %54 : vector<4x1xf32> to vector<4x256xf32>
    %56 = arith.addf %53, %55 : vector<4x256xf32>
    %cst = arith.constant 0.000000e+00 : f32
    %57 = vector.broadcast %cst : f32 to vector<4x256xf32>
    %58 = arith.cmpf ogt, %56, %57 : vector<4x256xf32>
    %cst_11 = arith.constant 1.000000e-01 : f32
    %59 = vector.broadcast %cst_11 : f32 to vector<4x256xf32>
    %60 = arith.mulf %59, %56 : vector<4x256xf32>
    %61 = arith.select %58, %56, %60 : vector<4x256xi1>, vector<4x256xf32>
    %c0_12 = arith.constant 0 : index
    %c0_13 = arith.constant 0 : index
    %62 = vector.load %arg3[%c0_12, %c0_13] : memref<4x4xf32, #tpu.memory_space<vmem>>, vector<4x4xf32>
    %63 = vector.extract_strided_slice %62 {offsets = [0, 0], sizes = [4, 1], strides = [1, 1]} : vector<4x4xf32> to vector<4x1xf32>
    %64 = vector.extract_strided_slice %61 {offsets = [0, 0], sizes = [1, 256], strides = [1, 1]} : vector<4x256xf32> to vector<1x256xf32>
    %65 = vector.broadcast %63 : vector<4x1xf32> to vector<4x256xf32>
    %66 = vector.broadcast %64 : vector<1x256xf32> to vector<4x256xf32>
    %67 = arith.mulf %65, %66 : vector<4x256xf32>
    %68 = vector.extract_strided_slice %62 {offsets = [0, 1], sizes = [4, 1], strides = [1, 1]} : vector<4x4xf32> to vector<4x1xf32>
    %69 = vector.extract_strided_slice %61 {offsets = [1, 0], sizes = [1, 256], strides = [1, 1]} : vector<4x256xf32> to vector<1x256xf32>
    %70 = vector.broadcast %68 : vector<4x1xf32> to vector<4x256xf32>
    %71 = vector.broadcast %69 : vector<1x256xf32> to vector<4x256xf32>
    %72 = arith.mulf %70, %71 : vector<4x256xf32>
    %73 = arith.addf %67, %72 : vector<4x256xf32>
    %74 = vector.extract_strided_slice %62 {offsets = [0, 2], sizes = [4, 1], strides = [1, 1]} : vector<4x4xf32> to vector<4x1xf32>
    %75 = vector.extract_strided_slice %61 {offsets = [2, 0], sizes = [1, 256], strides = [1, 1]} : vector<4x256xf32> to vector<1x256xf32>
    %76 = vector.broadcast %74 : vector<4x1xf32> to vector<4x256xf32>
    %77 = vector.broadcast %75 : vector<1x256xf32> to vector<4x256xf32>
    %78 = arith.mulf %76, %77 : vector<4x256xf32>
    %79 = arith.addf %73, %78 : vector<4x256xf32>
    %80 = vector.extract_strided_slice %62 {offsets = [0, 3], sizes = [4, 1], strides = [1, 1]} : vector<4x4xf32> to vector<4x1xf32>
    %81 = vector.extract_strided_slice %61 {offsets = [3, 0], sizes = [1, 256], strides = [1, 1]} : vector<4x256xf32> to vector<1x256xf32>
    %82 = vector.broadcast %80 : vector<4x1xf32> to vector<4x256xf32>
    %83 = vector.broadcast %81 : vector<1x256xf32> to vector<4x256xf32>
    %84 = arith.mulf %82, %83 : vector<4x256xf32>
    %85 = arith.addf %79, %84 : vector<4x256xf32>
    %c0_14 = arith.constant 0 : index
    %c0_15 = arith.constant 0 : index
    %86 = vector.load %arg5[%c0_14, %c0_15] : memref<4x1xf32, #tpu.memory_space<vmem>>, vector<4x1xf32>
    %87 = vector.broadcast %86 : vector<4x1xf32> to vector<4x256xf32>
    %88 = arith.addf %85, %87 : vector<4x256xf32>
    %cst_16 = arith.constant 0.000000e+00 : f32
    %89 = vector.broadcast %cst_16 : f32 to vector<4x256xf32>
    %90 = arith.cmpf ogt, %88, %89 : vector<4x256xf32>
    %cst_17 = arith.constant 1.000000e-01 : f32
    %91 = vector.broadcast %cst_17 : f32 to vector<4x256xf32>
    %92 = arith.mulf %91, %88 : vector<4x256xf32>
    %93 = arith.select %90, %88, %92 : vector<4x256xi1>, vector<4x256xf32>
    %94 = arith.addf %93, %1 : vector<4x256xf32>
    %c0_18 = arith.constant 0 : index
    %c0_19 = arith.constant 0 : index
    %c0_20 = arith.constant 0 : index
    %95 = vector.load %arg7[%c0_18, %c0_19, %c0_20] : memref<1x4x256xf32, #tpu.memory_space<vmem>>, vector<1x4x256xf32>
    %96 = vector.shape_cast %95 : vector<1x4x256xf32> to vector<4x256xf32>
    %97 = vector.shape_cast %94 : vector<4x256xf32> to vector<1x4x256xf32>
    tpu.vector_store %arg7[%c0_18, %c0_19, %c0_20], %97 {strides = array<i32>} : memref<1x4x256xf32, #tpu.memory_space<vmem>>, vector<1x4x256xf32>,
    return
  }
  func.func @transform_0(%arg0: i32) -> (i32, i32, i32) {
    %c0_i32 = arith.constant 0 : i32
    %c0_i32_0 = arith.constant 0 : i32
    %c0_i32_1 = arith.constant 0 : i32
    return %arg0, %c0_i32, %c0_i32_0 : i32, i32, i32
  }
  func.func @transform_1(%arg0: i32) -> (i32, i32) {
    %c0_i32 = arith.constant 0 : i32
    %c0_i32_0 = arith.constant 0 : i32
    %c0_i32_1 = arith.constant 0 : i32
    return %c0_i32, %c0_i32_0 : i32, i32
  }
  func.func @transform_2(%arg0: i32) -> (i32, i32) {
    %c0_i32 = arith.constant 0 : i32
    %c0_i32_0 = arith.constant 0 : i32
    %c0_i32_1 = arith.constant 0 : i32
    return %c0_i32, %c0_i32_0 : i32, i32
  }
  func.func @transform_3(%arg0: i32) -> (i32, i32) {
    %c0_i32 = arith.constant 0 : i32
    %c0_i32_0 = arith.constant 0 : i32
    %c0_i32_1 = arith.constant 0 : i32
    return %c0_i32, %c0_i32_0 : i32, i32
  }
  func.func @transform_4(%arg0: i32) -> (i32, i32) {
    %c0_i32 = arith.constant 0 : i32
    %c0_i32_0 = arith.constant 0 : i32
    %c0_i32_1 = arith.constant 0 : i32
    return %c0_i32, %c0_i32_0 : i32, i32
  }
  func.func @transform_5(%arg0: i32) -> (i32, i32) {
    %c0_i32 = arith.constant 0 : i32
    %c0_i32_0 = arith.constant 0 : i32
    %c0_i32_1 = arith.constant 0 : i32
    return %c0_i32, %c0_i32_0 : i32, i32
  }
  func.func @transform_6(%arg0: i32) -> (i32, i32, i32) {
    %c0_i32 = arith.constant 0 : i32
    %c0_i32_0 = arith.constant 0 : i32
    %c0_i32_1 = arith.constant 0 : i32
    return %arg0, %c0_i32, %c0_i32_0 : i32, i32, i32
  }
}

</mosaic_0001>

<llo_original>
// kernel: tpu_custom_call.1
$region0: #{tpu_custom_call.1}
  #allocation0 [shape = 'u32[]', space=smem, size = 0x4, offset = 0x4, fixed_abs, tag = 'smem constant byte address 0x4 - core index']
  #allocation1 [shape = 'u32[72,128]{1,0:T(1,128)}', space=vmem, size = 0x9000, scoped, tag = 'internal scratch']
  %s0 = inlined_call_operand.hbm [shape: f32[2,4,256], index: 0, kind: input, shape index: {}]
  %s1 = inlined_call_operand.hbm [shape: f32[4,9], index: 1, kind: input, shape index: {}]
  %s2 = inlined_call_operand.hbm [shape: f32[4,4], index: 2, kind: input, shape index: {}]
  %s3 = inlined_call_operand.vmem [shape: f32[4,1], index: 3, kind: input, shape index: {}]
  %s4 = inlined_call_operand.vmem [shape: f32[4,1], index: 4, kind: input, shape index: {}]
  %s5 = inlined_call_operand.vmem [shape: f32[4,256], index: 5, kind: input, shape index: {}]
  %s6 = inlined_call_operand.hbm [shape: f32[2,4,256], index: 6, kind: output, shape index: {}]
  %s7 = sld [smem:[#allocation0]]
  $region69: #{tpu_custom_call.1} parent=0
    _
  %s9 = ssub.s32 1, %s7
  %s10 = scalar_select 0, %s9, %s7
  $region1: #{tpu_custom_call.1} parent=0
    #allocation2 [shape = 'u8[8192]{0}', space=vmem, size = 0x2000, scoped, tag = 'input window, operand 0']
    #allocation3 [shape = 's32[2]{0}', space=sflag, size = 0x8, scoped, tag = 'scoped memory for tpu_custom_call.1']
    #allocation4 [shape = 's32[2]{0}', space=sflag, size = 0x8, scoped, tag = 'scoped memory for tpu_custom_call.1']
    #allocation5 [shape = 'u8[2048]{0}', space=vmem, size = 0x800, scoped, tag = 'input window, operand 1, single buffered']
    #allocation6 [shape = 's32[1]{0}', space=sflag, size = 0x4, scoped, tag = 'scoped memory for tpu_custom_call.1']
    #allocation7 [shape = 'u8[2048]{0}', space=vmem, size = 0x800, scoped, tag = 'input window, operand 2, single buffered']
    #allocation8 [shape = 'u8[8192]{0}', space=vmem, size = 0x2000, scoped, tag = 'output window, operand 0']
    %11 = vsyncpa [#allocation3], 0
    %s12 = scalar_lea.sflag [#allocation3], 1
    %13 = vsyncpa %s12, 0
    %14 = vsyncpa [#allocation6], 0
    %15 = vsyncpa [#allocation4], 0
    %s16 = scalar_lea.sflag [#allocation4], 1
    %17 = vsyncpa %s16, 0
    loop: start=0, step=1, limit=4
    $region2: #{tpu_custom_call.1} parent=1 // loop_pre_header
      _
    $region3: #{tpu_custom_call.1} parent=1 // loop_header
      %s19 = sphi 0, %s23
      %p20 = scmp.ge.s32.totalorder %s19, 4
      %s29 = sphi 0, %s31
      %s32 = sphi 0, %s29
      %s33 = sphi 0, %s32
      %s49 = sphi 0, %s33
      %s53 = sphi 0, %s53
      %s55 = sphi 0, %s53
      %s56 = sphi 0, %s55
      %s70 = sphi 0, %s56
      %s74 = sphi 0, %s74
      %s76 = sphi 0, %s74
      %s77 = sphi 0, %s76
      %s91 = sphi 0, %s77
      %s95 = sphi 0, %s95
      %s97 = sphi 0, %s95
      %s98 = sphi 0, %s97
      %s112 = sphi 0, %s98
      %s116 = sphi 0, %s116
      %s118 = sphi 0, %s116
      %s119 = sphi 0, %s118
      %s133 = sphi 0, %s119
      %s137 = sphi 0, %s137
      %s139 = sphi 0, %s137
      %s140 = sphi 0, %s139
      %s154 = sphi 0, %s140
      %s160 = sphi 0, %s162
      %s163 = sphi 0, %s160
      %s164 = sphi 0, %s163
      %s180 = sphi 0, %s164
    $region4: #{tpu_custom_call.1} parent=1 // loop_header_branch
      %22 = sbr.rel (%p20) target = $region8
    $region5: #{tpu_custom_call.1} parent=1 // loop_body
      %s24 = ssub.s32 %s19, 1
      %s25 = ssub.s32 %s19, 2
      %s26 = sadd.s32 %s19, 1
      %s27 = ssub.s32 %s19, %s26
      %p28 = scmp.eq.s32.totalorder %s27, 0
      %s30 = sadd.s32 %s29, 1
      %s31 = scalar_select %p28, %s29, %s30
      %p34 = pneg %p28
      %p35 = scmp.eq.s32.totalorder %s19, 1
      %p36 = por %p34, %p35
      %p37 = scmp.ne.s32.totalorder %s29, %s32
      %p38 = scmp.eq.s32.totalorder %s19, 0
      %p39 = por %p37, %p38
      %p40 = scmp.ne.s32.totalorder %s29, %s32
      %p41 = scmp.eq.s32.totalorder %s24, 1
      %p42 = por %p40, %p41
      %p43 = scmp.ne.s32.totalorder %s32, %s33
      %p44 = scmp.eq.s32.totalorder %s24, 0
      %p45 = por %p43, %p44
      %p46 = scmp.ne.s32.totalorder %s32, %s33
      %p47 = scmp.eq.s32.totalorder %s25, 1
      %p48 = por %p46, %p47
      %p50 = scmp.ne.s32.totalorder %s33, %s49
      %p51 = scmp.eq.s32.totalorder %s25, 0
      %p52 = por %p50, %p51
      %s54 = sadd.s32 %s53, 1
      %p57 = scmp.eq.s32.totalorder %s19, 1
      %p58 = scmp.ne.s32.totalorder %s53, %s55
      %p59 = scmp.eq.s32.totalorder %s19, 0
      %p60 = por %p58, %p59
      %p61 = scmp.ne.s32.totalorder %s53, %s55
      %p62 = scmp.eq.s32.totalorder %s24, 1
      %p63 = por %p61, %p62
      %p64 = scmp.ne.s32.totalorder %s55, %s56
      %p65 = scmp.eq.s32.totalorder %s24, 0
      %p66 = por %p64, %p65
      %p67 = scmp.ne.s32.totalorder %s55, %s56
      %p68 = scmp.eq.s32.totalorder %s25, 1
      %p69 = por %p67, %p68
      %p71 = scmp.ne.s32.totalorder %s56, %s70
      %p72 = scmp.eq.s32.totalorder %s25, 0
      %p73 = por %p71, %p72
      %s75 = sadd.s32 %s74, 1
      %p78 = scmp.eq.s32.totalorder %s19, 1
      %p79 = scmp.ne.s32.totalorder %s74, %s76
      %p80 = scmp.eq.s32.totalorder %s19, 0
      %p81 = por %p79, %p80
      %p82 = scmp.ne.s32.totalorder %s74, %s76
      %p83 = scmp.eq.s32.totalorder %s24, 1
      %p84 = por %p82, %p83
      %p85 = scmp.ne.s32.totalorder %s76, %s77
      %p86 = scmp.eq.s32.totalorder %s24, 0
      %p87 = por %p85, %p86
      %p88 = scmp.ne.s32.totalorder %s76, %s77
      %p89 = scmp.eq.s32.totalorder %s25, 1
      %p90 = por %p88, %p89
      %p92 = scmp.ne.s32.totalorder %s77, %s91
      %p93 = scmp.eq.s32.totalorder %s25, 0
      %p94 = por %p92, %p93
      %s96 = sadd.s32 %s95, 1
      %p99 = scmp.eq.s32.totalorder %s19, 1
      %p100 = scmp.ne.s32.totalorder %s95, %s97
      %p101 = scmp.eq.s32.totalorder %s19, 0
      %p102 = por %p100, %p101
      %p103 = scmp.ne.s32.totalorder %s95, %s97
      %p104 = scmp.eq.s32.totalorder %s24, 1
      %p105 = por %p103, %p104
      %p106 = scmp.ne.s32.totalorder %s97, %s98
      %p107 = scmp.eq.s32.totalorder %s24, 0
      %p108 = por %p106, %p107
      %p109 = scmp.ne.s32.totalorder %s97, %s98
      %p110 = scmp.eq.s32.totalorder %s25, 1
      %p111 = por %p109, %p110
      %p113 = scmp.ne.s32.totalorder %s98, %s112
      %p114 = scmp.eq.s32.totalorder %s25, 0
      %p115 = por %p113, %p114
      %s117 = sadd.s32 %s116, 1
      %p120 = scmp.eq.s32.totalorder %s19, 1
      %p121 = scmp.ne.s32.totalorder %s116, %s118
      %p122 = scmp.eq.s32.totalorder %s19, 0
      %p123 = por %p121, %p122
      %p124 = scmp.ne.s32.totalorder %s116, %s118
      %p125 = scmp.eq.s32.totalorder %s24, 1
      %p126 = por %p124, %p125
      %p127 = scmp.ne.s32.totalorder %s118, %s119
      %p128 = scmp.eq.s32.totalorder %s24, 0
      %p129 = por %p127, %p128
      %p130 = scmp.ne.s32.totalorder %s118, %s119
      %p131 = scmp.eq.s32.totalorder %s25, 1
      %p132 = por %p130, %p131
      %p134 = scmp.ne.s32.totalorder %s119, %s133
      %p135 = scmp.eq.s32.totalorder %s25, 0
      %p136 = por %p134, %p135
      %s138 = sadd.s32 %s137, 1
      %p141 = scmp.eq.s32.totalorder %s19, 1
      %p142 = scmp.ne.s32.totalorder %s137, %s139
      %p143 = scmp.eq.s32.totalorder %s19, 0
      %p144 = por %p142, %p143
      %p145 = scmp.ne.s32.totalorder %s137, %s139
      %p146 = scmp.eq.s32.totalorder %s24, 1
      %p147 = por %p145, %p146
      %p148 = scmp.ne.s32.totalorder %s139, %s140
      %p149 = scmp.eq.s32.totalorder %s24, 0
      %p150 = por %p148, %p149
      %p151 = scmp.ne.s32.totalorder %s139, %s140
      %p152 = scmp.eq.s32.totalorder %s25, 1
      %p153 = por %p151, %p152
      %p155 = scmp.ne.s32.totalorder %s140, %s154
      %p156 = scmp.eq.s32.totalorder %s25, 0
      %p157 = por %p155, %p156
      %s158 = ssub.s32 %s19, %s26
      %p159 = scmp.eq.s32.totalorder %s158, 0
      %s161 = sadd.s32 %s160, 1
      %s162 = scalar_select %p159, %s160, %s161
      %p165 = pneg %p159
      %p166 = scmp.eq.s32.totalorder %s19, 1
      %p167 = por %p165, %p166
      %p168 = scmp.ne.s32.totalorder %s160, %s163
      %p169 = scmp.eq.s32.totalorder %s19, 0
      %p170 = por %p168, %p169
      %p171 = scmp.ne.s32.totalorder %s160, %s163
      %p172 = scmp.eq.s32.totalorder %s24, 1
      %p173 = por %p171, %p172
      %p174 = scmp.ne.s32.totalorder %s163, %s164
      %p175 = scmp.eq.s32.totalorder %s24, 0
      %p176 = por %p174, %p175
      %p177 = scmp.ne.s32.totalorder %s163, %s164
      %p178 = scmp.eq.s32.totalorder %s25, 1
      %p179 = por %p177, %p178
      %p181 = scmp.ne.s32.totalorder %s164, %s180
      %p182 = scmp.eq.s32.totalorder %s25, 0
      %p183 = por %p181, %p182
      %p184 = scmp.le.s32.totalorder 1, %s19
      %p185 = scmp.lt.s32.totalorder %s19, 3
      %p186 = pnand %p184, %p185
      %p187 = pneg %p186
      // Predicated region
      $region9: #{tpu_custom_call.1} parent=5 // pred_check
        _
      $region10: #{tpu_custom_call.1} parent=5 // pred_check_branch
        %189 = sbr.rel (%p186) target = $region12
      $region11: #{tpu_custom_call.1} parent=5 // pred_region
        %s190 = ssub.s32 %s19, 1
        // Predicated region
        $region13: #{tpu_custom_call.1} parent=11 // pred_check
          %p191 = pneg %p66
        $region14: #{tpu_custom_call.1} parent=11 // pred_check_branch
          %193 = sbr.rel (%p191) target = $region16
        $region15: #{tpu_custom_call.1} parent=11 // pred_region
          %195 = vsyncadd [#allocation6], 0
          %s197 = sshll.u32 %s1, 4
          %s198 = int_to_ptr.hbm [resolvable:$true] %s197
          %s199 = sshll.u32 [#allocation5], 4
          %s200 = int_to_ptr.vmem [resolvable:$true] %s199
          %202 = dma.hbm_to_vmem [thread:$0]  %s198, 64, %s200, [#allocation6]
        $region16: #{tpu_custom_call.1} parent=11 // pred_fallthru
          _
        // Predicated region
        $region17: #{tpu_custom_call.1} parent=11 // pred_check
          %p203 = pneg %p87
        $region18: #{tpu_custom_call.1} parent=11 // pred_check_branch
          %205 = sbr.rel (%p203) target = $region20
        $region19: #{tpu_custom_call.1} parent=11 // pred_region
          %207 = vsyncadd [#allocation6], 0
          %s209 = sshll.u32 %s2, 4
          %s210 = int_to_ptr.hbm [resolvable:$true] %s209
          %s211 = sshll.u32 [#allocation7], 4
          %s212 = int_to_ptr.vmem [resolvable:$true] %s211
          %214 = dma.hbm_to_vmem [thread:$0]  %s210, 64, %s212, [#allocation6]
        $region20: #{tpu_custom_call.1} parent=11 // pred_fallthru
          _
        // Predicated region
        $region21: #{tpu_custom_call.1} parent=11 // pred_check
          %p215 = pneg %p108
        $region22: #{tpu_custom_call.1} parent=11 // pred_check_branch
          %217 = sbr.rel (%p215) target = $region24
        $region23: #{tpu_custom_call.1} parent=11 // pred_region
          _
        $region24: #{tpu_custom_call.1} parent=11 // pred_fallthru
          _
        // Predicated region
        $region25: #{tpu_custom_call.1} parent=11 // pred_check
          %p218 = pneg %p129
        $region26: #{tpu_custom_call.1} parent=11 // pred_check_branch
          %220 = sbr.rel (%p218) target = $region28
        $region27: #{tpu_custom_call.1} parent=11 // pred_region
          _
        $region28: #{tpu_custom_call.1} parent=11 // pred_fallthru
          _
        // Predicated region
        $region29: #{tpu_custom_call.1} parent=11 // pred_check
          %p221 = pneg %p150
        $region30: #{tpu_custom_call.1} parent=11 // pred_check_branch
          %223 = sbr.rel (%p221) target = $region32
        $region31: #{tpu_custom_call.1} parent=11 // pred_region
          _
        $region32: #{tpu_custom_call.1} parent=11 // pred_fallthru
          _
      $region12: #{tpu_custom_call.1} parent=5 // pred_fallthru
        _
      %p224 = scmp.lt.s32.totalorder %s19, 2
      // Predicated region
      $region33: #{tpu_custom_call.1} parent=5 // pred_check
        %p225 = pneg %p224
      $region34: #{tpu_custom_call.1} parent=5 // pred_check_branch
        %227 = sbr.rel (%p225) target = $region36
      $region35: #{tpu_custom_call.1} parent=5 // pred_region
        // Predicated region
        $region37: #{tpu_custom_call.1} parent=35 // pred_check
          %p228 = pneg %p39
        $region38: #{tpu_custom_call.1} parent=35 // pred_check_branch
          %230 = sbr.rel (%p228) target = $region40
        $region39: #{tpu_custom_call.1} parent=35 // pred_region
          %s231 = sand.u32 %s29, 1
          %s232 = scalar_lea.sflag [#allocation3], %s231
          %s233 = sand.u32 %s29, 1
          %s234 = smul.addr %s233, 8
          %s235 = scalar_lea.vmem [#allocation2], %s234
          %237 = vsyncadd %s232, 0
          %s238 = smul.addr %s19, 2
          %s239 = smul.addr %s238, 4
          %s240 = scalar_lea.hbm %s0, %s239
          %s242 = sshll.u32 %s240, 4
          %s243 = int_to_ptr.hbm [resolvable:$true] %s242
          %s244 = sshll.u32 %s235, 4
          %s245 = int_to_ptr.vmem [resolvable:$true] %s244
          %247 = dma.hbm_to_vmem [thread:$0]  %s243, 128, %s245, %s232
        $region40: #{tpu_custom_call.1} parent=35 // pred_fallthru
          _
      $region36: #{tpu_custom_call.1} parent=5 // pred_fallthru
        _
      %p248 = scmp.le.s32.totalorder 1, %s19
      %p249 = scmp.lt.s32.totalorder %s19, 3
      %p250 = pnand %p248, %p249
      %p251 = pneg %p250
      // Predicated region
      $region41: #{tpu_custom_call.1} parent=5 // pred_check
        _
      $region42: #{tpu_custom_call.1} parent=5 // pred_check_branch
        %253 = sbr.rel (%p250) target = $region44
      $region43: #{tpu_custom_call.1} parent=5 // pred_region
        %s254 = ssub.s32 %s19, 1
        %s255 = sand.u32 %s32, 1
        %s256 = scalar_lea.sflag [#allocation3], %s255
        %s257 = sand.u32 %s32, 1
        %s258 = smul.addr %s257, 8
        %s259 = scalar_lea.vmem [#allocation2], %s258
        // Predicated region
        $region45: #{tpu_custom_call.1} parent=43 // pred_check
          %p260 = pneg %p45
        $region46: #{tpu_custom_call.1} parent=43 // pred_check_branch
          %262 = sbr.rel (%p260) target = $region48
        $region47: #{tpu_custom_call.1} parent=43 // pred_region
          %264 = dma.done %s256, 128
        $region48: #{tpu_custom_call.1} parent=43 // pred_fallthru
          _
        // Predicated region
        $region49: #{tpu_custom_call.1} parent=43 // pred_check
          %p265 = pneg %p66
        $region50: #{tpu_custom_call.1} parent=43 // pred_check_branch
          %267 = sbr.rel (%p265) target = $region52
        $region51: #{tpu_custom_call.1} parent=43 // pred_region
          %269 = dma.done [#allocation6], 64
        $region52: #{tpu_custom_call.1} parent=43 // pred_fallthru
          _
        // Predicated region
        $region53: #{tpu_custom_call.1} parent=43 // pred_check
          %p270 = pneg %p87
        $region54: #{tpu_custom_call.1} parent=43 // pred_check_branch
          %272 = sbr.rel (%p270) target = $region56
        $region55: #{tpu_custom_call.1} parent=43 // pred_region
          %274 = dma.done [#allocation6], 64
        $region56: #{tpu_custom_call.1} parent=43 // pred_fallthru
          _
        %s275 = sand.u32 %s32, 1
        %s276 = scalar_lea.sflag [#allocation3], %s275
        %s277 = sand.u32 %s32, 1
        %s278 = smul.addr %s277, 8
        %s279 = scalar_lea.vmem [#allocation2], %s278
        %p280 = pneg %p45
        %p281 = pneg %p42
        %p282 = pneg %p66
        %p283 = pneg %p63
        %p284 = pneg %p87
        %p285 = pneg %p84
        %p286 = pneg %p108
        %p287 = pneg %p105
        %p288 = pneg %p129
        %p289 = pneg %p126
        %p290 = pneg %p150
        %p291 = pneg %p147
        %p292 = pneg %p176
        %p293 = pneg %p173
        %s294 = sand.u32 %s163, 1
        %s295 = scalar_lea.sflag [#allocation4], %s294
        %s296 = sand.u32 %s163, 1
        %s297 = smul.addr %s296, 8
        %s298 = scalar_lea.vmem [#allocation8], %s297
        %v299 = vld [vmem:[%s259] sm:$0xff]
        %v300 = vld [vmem:[%s5] ss:$4 sm:$0x3]
        %s301 = scalar_lea.vmem %s5, 1
        %v302 = vld [vmem:[%s301] ss:$4 sm:$0x3]
        %s303 = scalar_lea.vmem %s5, 2
        %v304 = vld [vmem:[%s303] ss:$4 sm:$0x3]
        %s305 = scalar_lea.vmem %s5, 3
        %v306 = vld [vmem:[%s305] ss:$4 sm:$0x3]
        %v308 = vperm.slane %v300, 0
        %v309 = vperm.slane %v300, 1
        %v310 = vrot.slane %v309, 4
        %vm311 = vcmask 1043456
        %v312 = vsel %vm311, %v308, %v310
        %v314 = vmul.f32 %v299, %v312
        %316 = vst [vmem:[#allocation1] ss:$2 sm:$0xff] %v314
        %v317 = vld.sshfl [vmem:[#allocation1] sm:$0xff pattern:$0x75316420]
        %v318 = vld.sshfl [vmem:[#allocation1 + $0x8] sm:$0xff pattern:$0x75316420]
        %321 = vrot.lane.b32.xlu0 %v317, 1
        %v322 = vpop.permute.xlu0 %321
        %323 = vrot.lane.b32.xlu0 %v318, 1
        %v324 = vpop.permute.xlu0 %323
        %v325 = vlaneseq
        %v326 = vand.u32 %v325, 127
        %vm327 = vcmp.lt.s32.totalorder %v326, 1
        %v328 = vsel %vm327, %v322, %v324
        %v329 = vsel %vm327, %v324, %v322
        %v331 = vperm.slane %v302, 0
        %v332 = vperm.slane %v302, 1
        %v333 = vrot.slane %v332, 4
        %v334 = vsel %vm311, %v331, %v333
        %v336 = vmul.f32 %v299, %v334
        %338 = vst [vmem:[#allocation1] ss:$2 sm:$0xff] %v336
        %v339 = vld.sshfl [vmem:[#allocation1] sm:$0xff pattern:$0x75316420]
        %v340 = vld.sshfl [vmem:[#allocation1 + $0x8] sm:$0xff pattern:$0x75316420]
        %343 = vrot.lane.b32.xlu0 %v339, 127
        %v344 = vpop.permute.xlu0 %343
        %345 = vrot.lane.b32.xlu0 %v340, 127
        %v346 = vpop.permute.xlu0 %345
        %vm347 = vcmp.lt.s32.totalorder %v326, 127
        %v348 = vsel %vm347, %v344, %v346
        %v349 = vsel %vm347, %v346, %v344
        %v350 = vld [vmem:[#allocation5] sm:$0xf]
        %352 = vset.pattern.permute.xlu0 0
        %353 = vperm.xlu0 %352, %v350
        %v354 = vpop.permute.xlu0 %353
        %v356 = vmul.f32 %v354, %v329
        %v357 = vmul.f32 %v354, %v328
        %358 = vset.pattern.permute.xlu0 1
        %359 = vperm.xlu0 %358, %v350
        %v360 = vpop.permute.xlu0 %359
        %363 = vst [vmem:[#allocation1] ss:$2 sm:$0xff] %v299
        %v364 = vld.sshfl [vmem:[#allocation1] sm:$0xff pattern:$0x75316420]
        %v365 = vld.sshfl [vmem:[#allocation1 + $0x8] sm:$0xff pattern:$0x75316420]
        %v368 = vmul.f32 %v360, %v364
        %v369 = vmul.f32 %v360, %v365
        %v370 = vadd.f32 %v356, %v368
        %v371 = vadd.f32 %v357, %v369
        %372 = vset.pattern.permute.xlu0 2
        %373 = vperm.xlu0 %372, %v350
        %v374 = vpop.permute.xlu0 %373
        %v376 = vmul.f32 %v374, %v348
        %v377 = vmul.f32 %v374, %v349
        %v378 = vadd.f32 %v370, %v376
        %v379 = vadd.f32 %v371, %v377
        %380 = vset.pattern.permute.xlu0 3
        %381 = vperm.xlu0 %380, %v350
        %v382 = vpop.permute.xlu0 %381
        %v384 = vmul.f32 %v382, %v329
        %v385 = vmul.f32 %v382, %v328
        %386 = vset.pattern.permute.xlu0 4
        %387 = vperm.xlu0 %386, %v350
        %v388 = vpop.permute.xlu0 %387
        %390 = vst [vmem:[#allocation1] ss:$2 sm:$0xff] %v299
        %v391 = vld.sshfl [vmem:[#allocation1] sm:$0xff pattern:$0x75316420]
        %v392 = vld.sshfl [vmem:[#allocation1 + $0x8] sm:$0xff pattern:$0x75316420]
        %v395 = vmul.f32 %v388, %v391
        %v396 = vmul.f32 %v388, %v392
        %v397 = vadd.f32 %v384, %v395
        %v398 = vadd.f32 %v385, %v396
        %399 = vset.pattern.permute.xlu0 5
        %400 = vperm.xlu0 %399, %v350
        %v401 = vpop.permute.xlu0 %400
        %v403 = vmul.f32 %v401, %v348
        %v404 = vmul.f32 %v401, %v349
        %v405 = vadd.f32 %v397, %v403
        %v406 = vadd.f32 %v398, %v404
        %407 = vset.pattern.permute.xlu0 6
        %408 = vperm.xlu0 %407, %v350
        %v409 = vpop.permute.xlu0 %408
        %v411 = vmul.f32 %v409, %v329
        %v412 = vmul.f32 %v409, %v328
        %413 = vset.pattern.permute.xlu0 7
        %414 = vperm.xlu0 %413, %v350
        %v415 = vpop.permute.xlu0 %414
        %417 = vst [vmem:[#allocation1] ss:$2 sm:$0xff] %v299
        %v418 = vld.sshfl [vmem:[#allocation1] sm:$0xff pattern:$0x75316420]
        %v419 = vld.sshfl [vmem:[#allocation1 + $0x8] sm:$0xff pattern:$0x75316420]
        %v422 = vmul.f32 %v415, %v418
        %v423 = vmul.f32 %v415, %v419
        %v424 = vadd.f32 %v411, %v422
        %v425 = vadd.f32 %v412, %v423
        %426 = vset.pattern.permute.xlu0 8
        %427 = vperm.xlu0 %426, %v350
        %v428 = vpop.permute.xlu0 %427
        %v430 = vmul.f32 %v428, %v348
        %v431 = vmul.f32 %v428, %v349
        %v432 = vadd.f32 %v424, %v430
        %v433 = vadd.f32 %v425, %v431
        %434 = vrot.lane.b32.xlu0 %v378, 16
        %v435 = vpop.permute.xlu0 %434
        %436 = vrot.lane.b32.xlu0 %v379, 16
        %v437 = vpop.permute.xlu0 %436
        %vm438 = vcmp.lt.s32.totalorder %v326, 16
        %v439 = vsel %vm438, %v435, %v437
        %v440 = vsel %vm438, %v437, %v435
        %v442 = vperm.slane %v304, 0
        %v443 = vperm.slane %v304, 1
        %v446 = vmul.f32 %v440, %v442
        %v447 = vmul.f32 %v439, %v443
        %v448 = vadd.f32 %v446, %v405
        %v449 = vadd.f32 %v447, %v406
        %450 = vrot.lane.b32.xlu0 %v432, 112
        %v451 = vpop.permute.xlu0 %450
        %452 = vrot.lane.b32.xlu0 %v433, 112
        %v453 = vpop.permute.xlu0 %452
        %vm454 = vcmp.lt.s32.totalorder %v326, 112
        %v455 = vsel %vm454, %v451, %v453
        %v456 = vsel %vm454, %v453, %v451
        %v458 = vperm.slane %v306, 0
        %v459 = vperm.slane %v306, 1
        %v462 = vmul.f32 %v455, %v458
        %v463 = vmul.f32 %v456, %v459
        %v464 = vadd.f32 %v448, %v462
        %v465 = vadd.f32 %v449, %v463
        %v466 = vld [vmem:[%s3] sm:$0xf]
        %468 = vset.pattern.permute.xlu0 0
        %469 = vperm.xlu0 %468, %v466
        %v470 = vpop.permute.xlu0 %469
        %v472 = vadd.f32 %v464, %v470
        %v473 = vadd.f32 %v465, %v470
        %vm474 = vcmp.gt.f32.partialorder %v472, 0.0
        %vm475 = vcmp.gt.f32.partialorder %v473, 0.0
        %v476 = vmul.f32 %v472, 0.1
        %v477 = vmul.f32 %v473, 0.1
        %v478 = vsel %vm474, %v472, %v476
        %v479 = vsel %vm475, %v473, %v477
        %v480 = vld [vmem:[#allocation7] sm:$0xf]
        %482 = vset.pattern.permute.xlu0 0
        %483 = vperm.xlu0 %482, %v480
        %v484 = vpop.permute.xlu0 %483
        %v486 = vperm.slane %v478, 0
        %v487 = vperm.slane %v479, 0
        %v488 = vmul.f32 %v484, %v486
        %v489 = vmul.f32 %v484, %v487
        %490 = vset.pattern.permute.xlu0 1
        %491 = vperm.xlu0 %490, %v480
        %v492 = vpop.permute.xlu0 %491
        %v494 = vperm.slane %v478, 1
        %v495 = vperm.slane %v479, 1
        %v496 = vmul.f32 %v492, %v494
        %v497 = vmul.f32 %v492, %v495
        %v498 = vadd.f32 %v488, %v496
        %v499 = vadd.f32 %v489, %v497
        %500 = vset.pattern.permute.xlu0 2
        %501 = vperm.xlu0 %500, %v480
        %v502 = vpop.permute.xlu0 %501
        %v504 = vperm.slane %v478, 2
        %v505 = vperm.slane %v479, 2
        %v506 = vmul.f32 %v502, %v504
        %v507 = vmul.f32 %v502, %v505
        %v508 = vadd.f32 %v498, %v506
        %v509 = vadd.f32 %v499, %v507
        %510 = vset.pattern.permute.xlu0 3
        %511 = vperm.xlu0 %510, %v480
        %v512 = vpop.permute.xlu0 %511
        %v514 = vperm.slane %v478, 3
        %v515 = vperm.slane %v479, 3
        %v516 = vmul.f32 %v512, %v514
        %v517 = vmul.f32 %v512, %v515
        %v518 = vadd.f32 %v508, %v516
        %v519 = vadd.f32 %v509, %v517
        %v520 = vld [vmem:[%s4] sm:$0xf]
        %522 = vset.pattern.permute.xlu0 0
        %523 = vperm.xlu0 %522, %v520
        %v524 = vpop.permute.xlu0 %523
        %v526 = vadd.f32 %v518, %v524
        %v527 = vadd.f32 %v519, %v524
        %vm528 = vcmp.gt.f32.partialorder %v526, 0.0
        %vm529 = vcmp.gt.f32.partialorder %v527, 0.0
        %v530 = vmul.f32 %v526, 0.1
        %v531 = vmul.f32 %v527, 0.1
        %v532 = vsel %vm528, %v526, %v530
        %v533 = vsel %vm529, %v527, %v531
        %534 = vst [vmem:[#allocation1] ss:$2 sm:$0xff] %v299
        %v535 = vld.sshfl [vmem:[#allocation1] sm:$0xff pattern:$0x75316420]
        %v536 = vld.sshfl [vmem:[#allocation1 + $0x8] sm:$0xff pattern:$0x75316420]
        %v539 = vadd.f32 %v532, %v535
        %v540 = vadd.f32 %v533, %v536
        %v543 = vrot.slane %v540, 4
        %v544 = vsel %vm311, %v539, %v543
        %546 = vst [vmem:[%s298] sm:$0xff] %v544
        %s547 = sand.u32 %s163, 1
        %s548 = scalar_lea.sflag [#allocation4], %s547
        %s549 = sand.u32 %s163, 1
        %s550 = smul.addr %s549, 8
        %s551 = scalar_lea.vmem [#allocation8], %s550
        // Predicated region
        $region57: #{tpu_custom_call.1} parent=43 // pred_check
          %p552 = pneg %p173
        $region58: #{tpu_custom_call.1} parent=43 // pred_check_branch
          %554 = sbr.rel (%p552) target = $region60
        $region59: #{tpu_custom_call.1} parent=43 // pred_region
          %556 = vsyncadd %s548, 0
          %s557 = smul.addr %s24, 2
          %s558 = smul.addr %s557, 4
          %s559 = scalar_lea.hbm %s6, %s558
          %s561 = sshll.u32 %s551, 4
          %s562 = int_to_ptr.vmem [resolvable:$true] %s561
          %s563 = sshll.u32 %s559, 4
          %s564 = int_to_ptr.hbm [resolvable:$true] %s563
          %566 = dma.vmem_to_hbm [thread:$0]  %s562, 128, %s564, %s548
        $region60: #{tpu_custom_call.1} parent=43 // pred_fallthru
          _
      $region44: #{tpu_custom_call.1} parent=5 // pred_fallthru
        _
      %p567 = scmp.le.s32.totalorder 2, %s19
      // Predicated region
      $region61: #{tpu_custom_call.1} parent=5 // pred_check
        %p568 = pneg %p567
      $region62: #{tpu_custom_call.1} parent=5 // pred_check_branch
        %570 = sbr.rel (%p568) target = $region64
      $region63: #{tpu_custom_call.1} parent=5 // pred_region
        %s571 = ssub.s32 %s19, 2
        // Predicated region
        $region65: #{tpu_custom_call.1} parent=63 // pred_check
          %p572 = pneg %p179
        $region66: #{tpu_custom_call.1} parent=63 // pred_check_branch
          %574 = sbr.rel (%p572) target = $region68
        $region67: #{tpu_custom_call.1} parent=63 // pred_region
          %s575 = sand.u32 %s164, 1
          %s576 = scalar_lea.sflag [#allocation4], %s575
          %s577 = sand.u32 %s164, 1
          %s578 = smul.addr %s577, 8
          %s579 = scalar_lea.vmem [#allocation8], %s578
          %581 = dma.done %s576, 128
        $region68: #{tpu_custom_call.1} parent=63 // pred_fallthru
          _
      $region64: #{tpu_custom_call.1} parent=5 // pred_fallthru
        _
    $region6: #{tpu_custom_call.1} parent=1 // loop_footer
      %s23 = sadd.s32 1, %s19
    $region7: #{tpu_custom_call.1} parent=1 // loop_footer_branch
      %18 = sbr.rel target = $region3
    $region8: #{tpu_custom_call.1} parent=1 // loop_exit
      _
    %582 = vsyncpa [#allocation3], 1
    %s583 = scalar_lea.sflag [#allocation3], 1
    %584 = vsyncpa %s583, 1
    %585 = vsyncpa [#allocation6], 1
    %586 = vsyncpa [#allocation4], 1
    %s587 = scalar_lea.sflag [#allocation4], 1
    %588 = vsyncpa %s587, 1

</llo_original>
